<compile_context>
chip_gen: v5e
topology: v5e:2x2
jax: 0.10.0
libtpu: 0.0.40
codegen_flags: <defaults>
</compile_context>

<pallas_src>
import functools

import jax
import jax.numpy as jnp
from jax.experimental import pallas as pl
from jax.experimental.pallas import tpu as pltpu


def _round_up(n, m):
    return ((n + m - 1) // m) * m


def critic_kernel(xT_ref, w1_ref, b1_ref, w2_ref, b2_ref, w3_ref, b3_ref, v_ref,
                  *, use_bf16_matmul: bool):
    # xT: (num_inputs, TB); weights are (out, in); biases are (out, 1).
    xT = xT_ref[...]
    w1 = w1_ref[...]
    w2 = w2_ref[...]
    if use_bf16_matmul:  # MXU-native operands on v6e/v7x; accumulate in fp32.
        xT = xT.astype(jnp.bfloat16)
        w1 = w1.astype(jnp.bfloat16)
        w2 = w2.astype(jnp.bfloat16)

    # fc1 + tanh -> (hidden, TB); bias broadcasts along lanes, tanh in fp32 (v5e-safe).
    h = jnp.tanh(jnp.dot(w1, xT, preferred_element_type=jnp.float32) + b1_ref[...])

    # fc2 + tanh -> (hidden, TB)
    h_mm = h.astype(jnp.bfloat16) if use_bf16_matmul else h
    h = jnp.tanh(jnp.dot(w2, h_mm, preferred_element_type=jnp.float32) + b2_ref[...])

    # fc3: single output row. VPU multiply + XLU sublane-reduce instead of an
    # MXU pass for one output column. Result (1, TB) is lane-dense.
    v_ref[...] = jnp.sum(w3_ref[...] * h, axis=0, keepdims=True) + b3_ref[...]


def critic_forward(x, params, *, tile_b=512, use_bf16_matmul=False):
    """x: (B, num_inputs) fp32. params: weights (out,in), biases (out,1), w3 (hidden,1).

    Returns (B, 1) value estimates, matching PyTorch Critic.forward.
    """
    B, num_inputs = x.shape
    hidden = params["w1"].shape[0]

    # Lane-dense tiling: TB multiple of 128; keep tiles modest so 2x double-
    # buffered input/output tiles + resident weights fit easily under the
    # scoped-VMEM default on every generation (incl. v7x's 64 MiB physical).
    TB = _round_up(min(tile_b, _round_up(B, 128)), 128)
    Bp = _round_up(B, TB)

    # Wrapper-side pad + transpose: pure layout plumbing so batch -> lane axis.
    xT = jnp.pad(x, ((0, Bp - B), (0, 0))).T  # (num_inputs, Bp)

    w1, b1 = params["w1"], params["b1"]
    w2, b2 = params["w2"], params["b2"]
    w3, b3 = params["w3"], params["b3"]

    # Weights/biases: constant index_map -> resident in VMEM across the grid.
    resident = lambda a: pl.BlockSpec(a.shape, lambda i: (0, 0))

    grid = (Bp // TB,)
    cost = pl.CostEstimate(
        flops=2 * B * (num_inputs * hidden + hidden * hidden + hidden),
        transcendentals=2 * B * hidden,
        bytes_accessed=4 * (Bp * num_inputs + Bp
                            + num_inputs * hidden + hidden * hidden
                            + 3 * hidden + 1),
    )

    kern = functools.partial(critic_kernel, use_bf16_matmul=use_bf16_matmul)
    out = pl.pallas_call(
        kern,
        out_shape=jax.ShapeDtypeStruct((1, Bp), jnp.float32),
        grid=grid,
        in_specs=[
            pl.BlockSpec((num_inputs, TB), lambda i: (0, i)),  # x^T batch tile
            resident(w1), resident(b1),
            resident(w2), resident(b2),
            resident(w3), resident(b3),
        ],
        out_specs=pl.BlockSpec((1, TB), lambda i: (0, i)),     # lane-dense output
        compiler_params=pltpu.CompilerParams(
            dimension_semantics=("parallel",),                 # megacore-shardable
        ),
        cost_estimate=cost,
    )(xT, w1, b1, w2, b2, w3, b3)

    return out[0, :B][:, None]  # (B, 1)


def init_params(key, num_inputs, hidden_size):
    """Matches PyTorch nn.Linear default init: U(-1/sqrt(fan_in), 1/sqrt(fan_in)).

    Weights stored (out, in) (same as torch); biases stored as (out, 1) columns;
    fc3 weight stored as a (hidden, 1) column for the in-kernel VPU reduce.
    """
    ks = jax.random.split(key, 6)

    def lin(kw, kb, fan_in, fan_out):
        bound = float(fan_in) ** -0.5
        w = jax.random.uniform(kw, (fan_out, fan_in), jnp.float32, -bound, bound)
        b = jax.random.uniform(kb, (fan_out, 1), jnp.float32, -bound, bound)
        return w, b

    w1, b1 = lin(ks[0], ks[1], num_inputs, hidden_size)
    w2, b2 = lin(ks[2], ks[3], hidden_size, hidden_size)
    w3_row, b3 = lin(ks[4], ks[5], hidden_size, 1)   # (1, hidden), (1, 1)
    return {"w1": w1, "b1": b1, "w2": w2, "b2": b2,
            "w3": w3_row.T, "b3": b3}                # w3: (hidden, 1)


if __name__ == "__main__":
    key = jax.random.PRNGKey(0)
    k_x, k_p = jax.random.split(key)

    batch = 8
    num_inputs = 16
    hidden_size = 32

    x = jax.random.normal(k_x, (batch, num_inputs), jnp.float32)
    params = init_params(k_p, num_inputs, hidden_size)

    v = critic_forward(x, params)
    jax.block_until_ready(v)

    # Plain-JAX reference of the same math (weights (out,in); w3 is (hidden,1)).
    h = jnp.tanh(x @ params["w1"].T + params["b1"].T)
    h = jnp.tanh(h @ params["w2"].T + params["b2"].T)
    v_ref = h @ params["w3"] + params["b3"].T
    assert v.shape == (batch, 1)
    assert jnp.allclose(v, v_ref, atol=1e-5, rtol=1e-5)

    print("KERNEL_OK")
</pallas_src>

<mosaic_0001>
module attributes {stable_mosaic.version = 11 : i64} {
  func.func @critic_kernel(%arg0: i32, %arg1: memref<16x128xf32, #tpu.memory_space<vmem>>, %arg2: memref<32x16xf32, #tpu.memory_space<vmem>>, %arg3: memref<32x1xf32, #tpu.memory_space<vmem>>, %arg4: memref<32x32xf32, #tpu.memory_space<vmem>>, %arg5: memref<32x1xf32, #tpu.memory_space<vmem>>, %arg6: memref<32x1xf32, #tpu.memory_space<vmem>>, %arg7: memref<1x1xf32, #tpu.memory_space<vmem>>, %arg8: memref<1x128xf32, #tpu.memory_space<vmem>>) attributes {dimension_semantics = [#tpu.dimension_semantics<parallel>], iteration_bounds = array<i64: 1>, scalar_prefetch = 0 : i64, scratch_operands = 0 : i64, tpu.core_type = #tpu.core_type<tc>, window_params = [{transform_indices = @transform_0, window_bounds = array<i64: 16, 128>}, {pipeline_mode = #tpu.pipeline_mode<synchronous>, transform_indices = @transform_1, window_bounds = array<i64: 32, 16>}, {pipeline_mode = #tpu.pipeline_mode<synchronous>, transform_indices = @transform_2, window_bounds = array<i64: 32, 1>}, {pipeline_mode = #tpu.pipeline_mode<synchronous>, transform_indices = @transform_3, window_bounds = array<i64: 32, 32>}, {pipeline_mode = #tpu.pipeline_mode<synchronous>, transform_indices = @transform_4, window_bounds = array<i64: 32, 1>}, {pipeline_mode = #tpu.pipeline_mode<synchronous>, transform_indices = @transform_5, window_bounds = array<i64: 32, 1>}, {pipeline_mode = #tpu.pipeline_mode<synchronous>, transform_indices = @transform_6, window_bounds = array<i64: 1, 1>}, {transform_indices = @transform_7, window_bounds = array<i64: 1, 128>}]} {
    %c0 = arith.constant 0 : index
    %c0_0 = arith.constant 0 : index
    %0 = vector.load %arg1[%c0, %c0_0] : memref<16x128xf32, #tpu.memory_space<vmem>>, vector<16x128xf32>
    %c0_1 = arith.constant 0 : index
    %c0_2 = arith.constant 0 : index
    %1 = vector.load %arg2[%c0_1, %c0_2] : memref<32x16xf32, #tpu.memory_space<vmem>>, vector<32x16xf32>
    %c0_3 = arith.constant 0 : index
    %c0_4 = arith.constant 0 : index
    %2 = vector.load %arg4[%c0_3, %c0_4] : memref<32x32xf32, #tpu.memory_space<vmem>>, vector<32x32xf32>
    %cst = arith.constant dense<0.000000e+00> : vector<32x128xf32>
    %3 = tpu.matmul %1, %0, %cst {dimension_numbers = #tpu.dot_dimension_numbers<[1], [0], [0], [1], [0, 0, 1, 1], [], []>} : vector<32x16xf32>, vector<16x128xf32>, vector<32x128xf32> -> vector<32x128xf32>
    %c0_5 = arith.constant 0 : index
    %c0_6 = arith.constant 0 : index
    %4 = vector.load %arg3[%c0_5, %c0_6] : memref<32x1xf32, #tpu.memory_space<vmem>>, vector<32x1xf32>
    %5 = vector.broadcast %4 : vector<32x1xf32> to vector<32x128xf32>
    %6 = arith.addf %3, %5 : vector<32x128xf32>
    %7 = math.tanh %6 : vector<32x128xf32>
    %cst_7 = arith.constant dense<0.000000e+00> : vector<32x128xf32>
    %8 = tpu.matmul %2, %7, %cst_7 {dimension_numbers = #tpu.dot_dimension_numbers<[1], [0], [0], [1], [0, 0, 1, 1], [], []>} : vector<32x32xf32>, vector<32x128xf32>, vector<32x128xf32> -> vector<32x128xf32>
    %c0_8 = arith.constant 0 : index
    %c0_9 = arith.constant 0 : index
    %9 = vector.load %arg5[%c0_8, %c0_9] : memref<32x1xf32, #tpu.memory_space<vmem>>, vector<32x1xf32>
    %10 = vector.broadcast %9 : vector<32x1xf32> to vector<32x128xf32>
    %11 = arith.addf %8, %10 : vector<32x128xf32>
    %12 = math.tanh %11 : vector<32x128xf32>
    %c0_10 = arith.constant 0 : index
    %c0_11 = arith.constant 0 : index
    %13 = vector.load %arg6[%c0_10, %c0_11] : memref<32x1xf32, #tpu.memory_space<vmem>>, vector<32x1xf32>
    %14 = vector.broadcast %13 : vector<32x1xf32> to vector<32x128xf32>
    %15 = arith.mulf %14, %12 : vector<32x128xf32>
    %cst_12 = arith.constant dense<0.000000e+00> : vector<128xf32>
    %16 = vector.multi_reduction <add>, %15, %cst_12 [0] : vector<32x128xf32> to vector<128xf32>
    %17 = vector.shape_cast %16 : vector<128xf32> to vector<1x128xf32>
    %c0_13 = arith.constant 0 : index
    %c0_14 = arith.constant 0 : index
    %18 = vector.load %arg7[%c0_13, %c0_14] : memref<1x1xf32, #tpu.memory_space<vmem>>, vector<1x1xf32>
    %19 = vector.broadcast %18 : vector<1x1xf32> to vector<1x128xf32>
    %20 = arith.addf %17, %19 : vector<1x128xf32>
    %c0_15 = arith.constant 0 : index
    %c0_16 = arith.constant 0 : index
    %21 = vector.load %arg8[%c0_15, %c0_16] : memref<1x128xf32, #tpu.memory_space<vmem>>, vector<1x128xf32>
    tpu.vector_store %arg8[%c0_15, %c0_16], %20 {strides = array<i32>} : memref<1x128xf32, #tpu.memory_space<vmem>>, vector<1x128xf32>,
    return
  }
  func.func @transform_0(%arg0: i32) -> (i32, i32) {
    %c0_i32 = arith.constant 0 : i32
    %c0_i32_0 = arith.constant 0 : i32
    return %c0_i32, %arg0 : i32, i32
  }
  func.func @transform_1(%arg0: i32) -> (i32, i32) {
    %c0_i32 = arith.constant 0 : i32
    %c0_i32_0 = arith.constant 0 : i32
    %c0_i32_1 = arith.constant 0 : i32
    return %c0_i32, %c0_i32_0 : i32, i32
  }
  func.func @transform_2(%arg0: i32) -> (i32, i32) {
    %c0_i32 = arith.constant 0 : i32
    %c0_i32_0 = arith.constant 0 : i32
    %c0_i32_1 = arith.constant 0 : i32
    return %c0_i32, %c0_i32_0 : i32, i32
  }
  func.func @transform_3(%arg0: i32) -> (i32, i32) {
    %c0_i32 = arith.constant 0 : i32
    %c0_i32_0 = arith.constant 0 : i32
    %c0_i32_1 = arith.constant 0 : i32
    return %c0_i32, %c0_i32_0 : i32, i32
  }
  func.func @transform_4(%arg0: i32) -> (i32, i32) {
    %c0_i32 = arith.constant 0 : i32
    %c0_i32_0 = arith.constant 0 : i32
    %c0_i32_1 = arith.constant 0 : i32
    return %c0_i32, %c0_i32_0 : i32, i32
  }
  func.func @transform_5(%arg0: i32) -> (i32, i32) {
    %c0_i32 = arith.constant 0 : i32
    %c0_i32_0 = arith.constant 0 : i32
    %c0_i32_1 = arith.constant 0 : i32
    return %c0_i32, %c0_i32_0 : i32, i32
  }
  func.func @transform_6(%arg0: i32) -> (i32, i32) {
    %c0_i32 = arith.constant 0 : i32
    %c0_i32_0 = arith.constant 0 : i32
    %c0_i32_1 = arith.constant 0 : i32
    return %c0_i32, %c0_i32_0 : i32, i32
  }
  func.func @transform_7(%arg0: i32) -> (i32, i32) {
    %c0_i32 = arith.constant 0 : i32
    %c0_i32_0 = arith.constant 0 : i32
    return %c0_i32, %arg0 : i32, i32
  }
}

</mosaic_0001>

<llo_original>
// kernel: tpu_custom_call.1
$region0: #{tpu_custom_call.1}
  #allocation0 [shape = 'u32[]', space=smem, size = 0x4, offset = 0x4, fixed_abs, tag = 'smem constant byte address 0x4 - core index']
  #allocation1 [shape = 'u32[72,128]{1,0:T(1,128)}', space=vmem, size = 0x9000, scoped, tag = 'internal scratch']
  #allocation2 [shape = 'f32[1,1]{1,0:T(1,128)S(1)}', space=vmem, size = 0x200, scoped, tag = 'scoped memory for tpu_custom_call.1']
  %s0 = inlined_call_operand.vmem [shape: f32[16,128], index: 0, kind: input, shape index: {}]
  %s1 = inlined_call_operand.vmem [shape: f32[32,16], index: 1, kind: input, shape index: {}]
  %s2 = inlined_call_operand.vmem [shape: f32[32,1], index: 2, kind: input, shape index: {}]
  %s3 = inlined_call_operand.vmem [shape: f32[32,32], index: 3, kind: input, shape index: {}]
  %s4 = inlined_call_operand.vmem [shape: f32[32,1], index: 4, kind: input, shape index: {}]
  %s5 = inlined_call_operand.vmem [shape: f32[32,1], index: 5, kind: input, shape index: {}]
  %s6 = inlined_call_operand.<no memory space> [shape: f32[1,1], index: 6, kind: input, shape index: {}]
  %s7 = inlined_call_operand.hbm [shape: f32[1,128], index: 7, kind: output, shape index: {}]
  %s8 = sld [smem:[#allocation0]]
  $region38: #{tpu_custom_call.1} parent=0
    _
  %s10 = ssub.s32 1, %s8
  %s11 = scalar_select 0, %s10, %s8
  %v12 = vstv %s6
  %13 = vst [vmem:[#allocation2] sm:$0x1] %v12
  $region1: #{tpu_custom_call.1} parent=0
    #allocation3 [shape = 'u8[512]{0}', space=vmem, size = 0x400, scoped, tag = 'output window, operand 0, single buffered']
    #allocation4 [shape = 's32[1]{0}', space=sflag, size = 0x4, scoped, tag = 'scoped memory for tpu_custom_call.1']
    %14 = vsyncpa [#allocation4], 0
    // Predicated region
    $region2: #{tpu_custom_call.1} parent=1 // pred_check
      _
    $region3: #{tpu_custom_call.1} parent=1 // pred_check_branch
      %16 = sbr.rel (0) target = $region5
    $region4: #{tpu_custom_call.1} parent=1 // pred_region
      _
    $region5: #{tpu_custom_call.1} parent=1 // pred_fallthru
      _
    // Predicated region
    $region6: #{tpu_custom_call.1} parent=1 // pred_check
      _
    $region7: #{tpu_custom_call.1} parent=1 // pred_check_branch
      %18 = sbr.rel (0) target = $region9
    $region8: #{tpu_custom_call.1} parent=1 // pred_region
      _
    $region9: #{tpu_custom_call.1} parent=1 // pred_fallthru
      _
    // Predicated region
    $region10: #{tpu_custom_call.1} parent=1 // pred_check
      _
    $region11: #{tpu_custom_call.1} parent=1 // pred_check_branch
      %20 = sbr.rel (0) target = $region13
    $region12: #{tpu_custom_call.1} parent=1 // pred_region
      _
    $region13: #{tpu_custom_call.1} parent=1 // pred_fallthru
      _
    // Predicated region
    $region14: #{tpu_custom_call.1} parent=1 // pred_check
      _
    $region15: #{tpu_custom_call.1} parent=1 // pred_check_branch
      %22 = sbr.rel (0) target = $region17
    $region16: #{tpu_custom_call.1} parent=1 // pred_region
      _
    $region17: #{tpu_custom_call.1} parent=1 // pred_fallthru
      _
    // Predicated region
    $region18: #{tpu_custom_call.1} parent=1 // pred_check
      _
    $region19: #{tpu_custom_call.1} parent=1 // pred_check_branch
      %24 = sbr.rel (0) target = $region21
    $region20: #{tpu_custom_call.1} parent=1 // pred_region
      _
    $region21: #{tpu_custom_call.1} parent=1 // pred_fallthru
      _
    // Predicated region
    $region22: #{tpu_custom_call.1} parent=1 // pred_check
      _
    $region23: #{tpu_custom_call.1} parent=1 // pred_check_branch
      %26 = sbr.rel (0) target = $region25
    $region24: #{tpu_custom_call.1} parent=1 // pred_region
      _
    $region25: #{tpu_custom_call.1} parent=1 // pred_fallthru
      _
    // Predicated region
    $region26: #{tpu_custom_call.1} parent=1 // pred_check
      _
    $region27: #{tpu_custom_call.1} parent=1 // pred_check_branch
      %28 = sbr.rel (0) target = $region29
    $region28: #{tpu_custom_call.1} parent=1 // pred_region
      _
    $region29: #{tpu_custom_call.1} parent=1 // pred_fallthru
      _
    %v29 = vld [vmem:[%s0] sm:$0xff]
    %v30 = vld [vmem:[%s0 + $0x8] sm:$0xff]
    %v31 = vld [vmem:[%s1] sm:$0xff]
    %v32 = vld [vmem:[%s1 + $0x8] sm:$0xff]
    %v33 = vld [vmem:[%s1 + $0x10] sm:$0xff]
    %v34 = vld [vmem:[%s1 + $0x18] sm:$0xff]
    %v35 = vld [vmem:[%s3] sm:$0xff]
    %v36 = vld [vmem:[%s3 + $0x8] sm:$0xff]
    %v37 = vld [vmem:[%s3 + $0x10] sm:$0xff]
    %v38 = vld [vmem:[%s3 + $0x18] sm:$0xff]
    %v39 = vld [vmem:[%s2] sm:$0xff]
    %v40 = vld [vmem:[%s2 + $0x8] sm:$0xff]
    %v41 = vld [vmem:[%s2 + $0x10] sm:$0xff]
    %v42 = vld [vmem:[%s2 + $0x18] sm:$0xff]
    %44 = vset.pattern.permute.xlu0 0
    %45 = vperm.xlu0 %44, %v39
    %v46 = vpop.permute.xlu0 %45
    %49 = vset.pattern.permute.xlu0 0
    %50 = vperm.xlu0 %49, %v40
    %v51 = vpop.permute.xlu0 %50
    %54 = vset.pattern.permute.xlu0 0
    %55 = vperm.xlu0 %54, %v41
    %v56 = vpop.permute.xlu0 %55
    %59 = vset.pattern.permute.xlu0 0
    %60 = vperm.xlu0 %59, %v42
    %v61 = vpop.permute.xlu0 %60
    %vm63 = vcmask 130048
    %v65 = vsel %vm63, %v31, 0
    %v68 = vsel %vm63, %v32, 0
    %v71 = vsel %vm63, %v33, 0
    %v74 = vsel %vm63, %v34, 0
    %76 = vmatpush.msra.mxu0 0.0
    %77 = vmatpush.msra.mxu0 0.0
    %78 = vmatpush.msra.mxu0 0.0
    %79 = vmatpush.msra.mxu0 0.0
    %80 = vmatpush.msra.mxu0 0.0
    %81 = vmatpush.msra.mxu0 0.0
    %82 = vmatpush.msra.mxu0 0.0
    %83 = vmatpush.msra.mxu0 0.0
    %84 = vmatpush.msra.mxu0 0.0
    %85 = vmatpush.msra.mxu0 0.0
    %86 = vmatpush.msra.mxu0 0.0
    %87 = vmatpush.msra.mxu0 0.0
    %88 = vmatpush.msra.mxu0 0.0
    %89 = vmatpush.msra.mxu0 0.0
    %90 = vmatpush.msra.mxu0 %v30
    %91 = vmatpush.msra.mxu0 %v29
    %92 = vmatmul.f32.gmra.mxu0 %v65
    %v93 = vpop.f32.mrf.mxu0
    %v94 = vadd.f32 %v46, %v93
    %95 = vmatmul.f32.gmra.mxu0 %v68
    %v96 = vpop.f32.mrf.mxu0
    %v97 = vadd.f32 %v51, %v96
    %98 = vmatmul.f32.gmra.mxu0 %v71
    %v99 = vpop.f32.mrf.mxu0
    %v100 = vadd.f32 %v56, %v99
    %101 = vmatmul.f32.gmra.mxu0 %v74
    %v102 = vpop.f32.mrf.mxu0
    %v103 = vadd.f32 %v61, %v102
    %104 = vdwg.mxu0
    %v105 = vtanh.pop %v94
    %v106 = vtanh.pop %v97
    %v107 = vtanh.pop %v100
    %v108 = vtanh.pop %v103
    %v109 = vld [vmem:[%s4] sm:$0xff]
    %v110 = vld [vmem:[%s4 + $0x8] sm:$0xff]
    %v111 = vld [vmem:[%s4 + $0x10] sm:$0xff]
    %v112 = vld [vmem:[%s4 + $0x18] sm:$0xff]
    %114 = vset.pattern.permute.xlu0 0
    %115 = vperm.xlu0 %114, %v109
    %v116 = vpop.permute.xlu0 %115
    %119 = vset.pattern.permute.xlu0 0
    %120 = vperm.xlu0 %119, %v110
    %v121 = vpop.permute.xlu0 %120
    %124 = vset.pattern.permute.xlu0 0
    %125 = vperm.xlu0 %124, %v111
    %v126 = vpop.permute.xlu0 %125
    %129 = vset.pattern.permute.xlu0 0
    %130 = vperm.xlu0 %129, %v112
    %v131 = vpop.permute.xlu0 %130
    %vm133 = vcmask 261120
    %v135 = vsel %vm133, %v35, 0
    %v138 = vsel %vm133, %v36, 0
    %v141 = vsel %vm133, %v37, 0
    %v144 = vsel %vm133, %v38, 0
    %146 = vmatpush.msra.mxu0 0.0
    %147 = vmatpush.msra.mxu0 0.0
    %148 = vmatpush.msra.mxu0 0.0
    %149 = vmatpush.msra.mxu0 0.0
    %150 = vmatpush.msra.mxu0 0.0
    %151 = vmatpush.msra.mxu0 0.0
    %152 = vmatpush.msra.mxu0 0.0
    %153 = vmatpush.msra.mxu0 0.0
    %154 = vmatpush.msra.mxu0 0.0
    %155 = vmatpush.msra.mxu0 0.0
    %156 = vmatpush.msra.mxu0 0.0
    %157 = vmatpush.msra.mxu0 0.0
    %158 = vmatpush.msra.mxu0 %v108
    %159 = vmatpush.msra.mxu0 %v107
    %160 = vmatpush.msra.mxu0 %v106
    %161 = vmatpush.msra.mxu0 %v105
    %162 = vmatmul.f32.gmra.mxu0 %v135
    %v163 = vpop.f32.mrf.mxu0
    %v164 = vadd.f32 %v116, %v163
    %165 = vmatmul.f32.gmra.mxu0 %v138
    %v166 = vpop.f32.mrf.mxu0
    %v167 = vadd.f32 %v121, %v166
    %168 = vmatmul.f32.gmra.mxu0 %v141
    %v169 = vpop.f32.mrf.mxu0
    %v170 = vadd.f32 %v126, %v169
    %171 = vmatmul.f32.gmra.mxu0 %v144
    %v172 = vpop.f32.mrf.mxu0
    %v173 = vadd.f32 %v131, %v172
    %174 = vdwg.mxu0
    %v175 = vtanh.pop %v164
    %v176 = vtanh.pop %v167
    %v177 = vtanh.pop %v170
    %v178 = vtanh.pop %v173
    %v179 = vld [vmem:[%s5] sm:$0xff]
    %v180 = vld [vmem:[%s5 + $0x8] sm:$0xff]
    %v181 = vld [vmem:[%s5 + $0x10] sm:$0xff]
    %v182 = vld [vmem:[%s5 + $0x18] sm:$0xff]
    %184 = vset.pattern.permute.xlu0 0
    %185 = vperm.xlu0 %184, %v179
    %v186 = vpop.permute.xlu0 %185
    %189 = vset.pattern.permute.xlu0 0
    %190 = vperm.xlu0 %189, %v180
    %v191 = vpop.permute.xlu0 %190
    %194 = vset.pattern.permute.xlu0 0
    %195 = vperm.xlu0 %194, %v181
    %v196 = vpop.permute.xlu0 %195
    %199 = vset.pattern.permute.xlu0 0
    %200 = vperm.xlu0 %199, %v182
    %v201 = vpop.permute.xlu0 %200
    %v203 = vmul.f32 %v186, %v175
    %v204 = vmul.f32 %v191, %v176
    %v205 = vmul.f32 %v196, %v177
    %v206 = vmul.f32 %v201, %v178
    %v207 = vadd.f32 %v203, %v204
    %v208 = vadd.f32 %v207, %v205
    %v209 = vadd.f32 %v208, %v206
    %v210 = vrot.slane %v209, 4
    %v211 = vadd.f32 %v209, %v210
    %v212 = vrot.slane %v211, 2
    %v213 = vadd.f32 %v211, %v212
    %v214 = vrot.slane %v213, 1
    %v215 = vadd.f32 %v213, %v214
    %v216 = vld [vmem:[#allocation2] sm:$0x1]
    %218 = vset.pattern.permute.xlu0 0
    %219 = vperm.xlu0 %218, %v216
    %v220 = vpop.permute.xlu0 %219
    %v222 = vperm.slane %v220, 0
    %v223 = vadd.f32 %v215, %v222
    %224 = vst [vmem:[#allocation3] sm:$0x1] %v223
    // Predicated region
    $region30: #{tpu_custom_call.1} parent=1 // pred_check
      _
    $region31: #{tpu_custom_call.1} parent=1 // pred_check_branch
      %226 = sbr.rel (0) target = $region33
    $region32: #{tpu_custom_call.1} parent=1 // pred_region
      %228 = vsyncadd [#allocation4], 0
      %s230 = sshll.u32 [#allocation3], 4
      %s231 = int_to_ptr.vmem [resolvable:$true] %s230
      %s232 = sshll.u32 %s7, 4
      %s233 = int_to_ptr.hbm [resolvable:$true] %s232
      %235 = dma.vmem_to_hbm [thread:$0]  %s231, 16, %s233, [#allocation4]
    $region33: #{tpu_custom_call.1} parent=1 // pred_fallthru
      _
    // Predicated region
    $region34: #{tpu_custom_call.1} parent=1 // pred_check
      _
    $region35: #{tpu_custom_call.1} parent=1 // pred_check_branch
      %237 = sbr.rel (0) target = $region37
    $region36: #{tpu_custom_call.1} parent=1 // pred_region
      %239 = dma.done [#allocation4], 16
    $region37: #{tpu_custom_call.1} parent=1 // pred_fallthru
      _
    %240 = vsyncpa [#allocation4], 1

</llo_original>
